<compile_context>
chip_gen: v7x
topology: tpu7x:2x2x1
jax: 0.10.0
libtpu: 0.0.40
codegen_flags: <defaults>
</compile_context>

<pallas_src>
import jax
import jax.numpy as jnp
from jax.experimental import pallas as pl
from jax.experimental.pallas import tpu as pltpu

_LANE = 128


def _round_up(x, m):
    return (x + m - 1) // m * m


def _make_kernel(d_in_p, mid_p, out_p):
    """Builds the fused 4-layer MLP kernel for padded dims."""
    o1 = 0
    o2 = o1 + d_in_p
    o3 = o2 + mid_p
    o4 = o3 + mid_p

    def kernel(x_ref, w_ref, b_ref, out_ref):
        # bf16 operands into the MXU, f32 accumulation, f32 elementwise.
        x = x_ref[...].astype(jnp.bfloat16)

        h = jnp.dot(x, w_ref[pl.ds(o1, d_in_p), :],
                    preferred_element_type=jnp.float32)
        h = jnp.maximum(h + b_ref[0:1, :], 0.0)

        h = jnp.dot(h.astype(jnp.bfloat16), w_ref[pl.ds(o2, mid_p), :],
                    preferred_element_type=jnp.float32)
        h = jnp.maximum(h + b_ref[1:2, :], 0.0)

        h = jnp.dot(h.astype(jnp.bfloat16), w_ref[pl.ds(o3, mid_p), :],
                    preferred_element_type=jnp.float32)
        h = jnp.maximum(h + b_ref[2:3, :], 0.0)

        v = jnp.dot(h.astype(jnp.bfloat16),
                    w_ref[pl.ds(o4, mid_p), pl.ds(0, out_p)],
                    preferred_element_type=jnp.float32)
        v = v + b_ref[3:4, pl.ds(0, out_p)]

        out_ref[...] = v.astype(out_ref.dtype)

    return kernel


def critic_ppo_forward(state, params, *, batch_tile=128):
    """state: [B, state_dim] float; params: dict w1..w4 ([in,out]), b1..b4 ([out])."""
    B, state_dim = state.shape
    w1, b1 = params["w1"], params["b1"]
    w2, b2 = params["w2"], params["b2"]
    w3, b3 = params["w3"], params["b3"]
    w4, b4 = params["w4"], params["b4"]
    mid_dim = w1.shape[1]

    d_in_p = _round_up(state_dim, _LANE)
    mid_p = _round_up(mid_dim, _LANE)
    out_p = _LANE                      # value head padded to one full lane block

    tb = batch_tile
    b_pad = _round_up(max(B, 1), tb)

    # Zero-padded activation slab (batch on sublanes, features on lanes).
    x_p = jnp.zeros((b_pad, d_in_p), jnp.float32)
    x_p = x_p.at[:B, :state_dim].set(state.astype(jnp.float32))

    def pad_w(w, rows, cols):
        out = jnp.zeros((rows, cols), jnp.bfloat16)
        return out.at[:w.shape[0], :w.shape[1]].set(w.astype(jnp.bfloat16))

    def pad_b(b, cols):
        b2d = jnp.reshape(b, (1, -1)).astype(jnp.float32)
        return jnp.zeros((1, cols), jnp.float32).at[:, :b2d.shape[1]].set(b2d)

    # Consolidated resident operands: one weight slab, one bias slab.
    w_slab = jnp.concatenate(
        [pad_w(w1, d_in_p, mid_p),
         pad_w(w2, mid_p, mid_p),
         pad_w(w3, mid_p, mid_p),
         pad_w(w4, mid_p, mid_p)],   # true width is 1; padded cols are zero
        axis=0)
    b_slab = jnp.concatenate(
        [pad_b(b1, mid_p), pad_b(b2, mid_p), pad_b(b3, mid_p), pad_b(b4, mid_p)],
        axis=0)
    w_rows = w_slab.shape[0]

    kernel = _make_kernel(d_in_p, mid_p, out_p)

    out_padded = pl.pallas_call(
        kernel,
        out_shape=jax.ShapeDtypeStruct((b_pad, out_p), jnp.float32),
        grid=(b_pad // tb,),
        in_specs=[
            pl.BlockSpec((tb, d_in_p), lambda i: (i, 0)),      # batch-tiled state
            pl.BlockSpec((w_rows, mid_p), lambda i: (0, 0)),   # resident weights
            pl.BlockSpec((4, mid_p), lambda i: (0, 0)),        # resident biases
        ],
        out_specs=pl.BlockSpec((tb, out_p), lambda i: (i, 0)),
        compiler_params=pltpu.CompilerParams(
            # Batch tiles are independent -> shard across TCs on v7x.
            # (Tile sizes here are tiny; re-derive vmem_limit_bytes only if
            #  mid_dim / batch_tile are scaled up on v7x's 64 MiB VMEM.)
            dimension_semantics=("parallel",)),
    )(x_p, w_slab, b_slab)

    return out_padded[:B, :1]


def init_params(key, state_dim, mid_dim):
    """nn.Linear-style U(-1/sqrt(fan_in), +1/sqrt(fan_in)) init.
    Weights stored as [in, out] (pre-transposed for x @ W)."""
    dims = [(state_dim, mid_dim), (mid_dim, mid_dim),
            (mid_dim, mid_dim), (mid_dim, 1)]
    params = {}
    for i, (fan_in, fan_out) in enumerate(dims, start=1):
        key, kw, kb = jax.random.split(key, 3)
        bound = 1.0 / jnp.sqrt(jnp.float32(fan_in))
        params[f"w{i}"] = jax.random.uniform(
            kw, (fan_in, fan_out), jnp.float32, -bound, bound)
        params[f"b{i}"] = jax.random.uniform(
            kb, (fan_out,), jnp.float32, -bound, bound)
    return params


def _reference_forward(state, params):
    """Pure-JAX reference with the same bf16-matmul / f32-accumulate numerics."""
    def lin(x, w, b):
        return jnp.dot(x.astype(jnp.bfloat16), w.astype(jnp.bfloat16),
                       preferred_element_type=jnp.float32) + b.astype(jnp.float32)
    h = jnp.maximum(lin(state, params["w1"], params["b1"]), 0.0)
    h = jnp.maximum(lin(h, params["w2"], params["b2"]), 0.0)
    h = jnp.maximum(lin(h, params["w3"], params["b3"]), 0.0)
    return lin(h, params["w4"], params["b4"])


if __name__ == "__main__":
    key = jax.random.PRNGKey(0)
    batch, state_dim, mid_dim = 256, 16, 128   # lane-friendly mid_dim, 2 batch tiles

    k_state, k_params = jax.random.split(key)
    state = jax.random.normal(k_state, (batch, state_dim), jnp.float32)
    params = init_params(k_params, state_dim, mid_dim)

    out = critic_ppo_forward(state, params, batch_tile=128)
    out = jax.block_until_ready(out)

    ref = _reference_forward(state, params)
    assert out.shape == (batch, 1)
    assert jnp.allclose(out, ref, atol=1e-2, rtol=1e-2), float(jnp.max(jnp.abs(out - ref)))

    print("KERNEL_OK")
</pallas_src>

<mosaic_0001>
module attributes {stable_mosaic.version = 11 : i64} {
  func.func @kernel(%arg0: i32, %arg1: memref<128x128xf32, #tpu.memory_space<vmem>>, %arg2: memref<512x128xbf16, #tpu.memory_space<vmem>>, %arg3: memref<4x128xf32, #tpu.memory_space<vmem>>, %arg4: memref<128x128xf32, #tpu.memory_space<vmem>>) attributes {dimension_semantics = [#tpu.dimension_semantics<parallel>], iteration_bounds = array<i64: 2>, scalar_prefetch = 0 : i64, scratch_operands = 0 : i64, tpu.core_type = #tpu.core_type<tc>, window_params = [{transform_indices = @transform_0, window_bounds = array<i64: 128, 128>}, {pipeline_mode = #tpu.pipeline_mode<synchronous>, transform_indices = @transform_1, window_bounds = array<i64: 512, 128>}, {pipeline_mode = #tpu.pipeline_mode<synchronous>, transform_indices = @transform_2, window_bounds = array<i64: 4, 128>}, {transform_indices = @transform_3, window_bounds = array<i64: 128, 128>}]} {
    %c0 = arith.constant 0 : index
    %c0_0 = arith.constant 0 : index
    %0 = vector.load %arg1[%c0, %c0_0] : memref<128x128xf32, #tpu.memory_space<vmem>>, vector<128x128xf32>
    %1 = arith.truncf %0 : vector<128x128xf32> to vector<128x128xbf16>
    %c0_1 = arith.constant 0 : index
    %c0_2 = arith.constant 0 : index
    %2 = vector.load %arg2[%c0_1, %c0_2] : memref<512x128xbf16, #tpu.memory_space<vmem>>, vector<128x128xbf16>
    %cst = arith.constant dense<0.000000e+00> : vector<128x128xf32>
    %3 = tpu.matmul %1, %2, %cst {dimension_numbers = #tpu.dot_dimension_numbers<[1], [0], [0], [1], [0, 0, 1, 1], [], []>} : vector<128x128xbf16>, vector<128x128xbf16>, vector<128x128xf32> -> vector<128x128xf32>
    %c0_3 = arith.constant 0 : index
    %c0_4 = arith.constant 0 : index
    %4 = vector.load %arg3[%c0_3, %c0_4] : memref<4x128xf32, #tpu.memory_space<vmem>>, vector<1x128xf32>
    %5 = vector.broadcast %4 : vector<1x128xf32> to vector<128x128xf32>
    %6 = arith.addf %3, %5 : vector<128x128xf32>
    %cst_5 = arith.constant 0.000000e+00 : f32
    %7 = vector.broadcast %cst_5 : f32 to vector<128x128xf32>
    %8 = arith.maximumf %6, %7 : vector<128x128xf32>
    %9 = arith.truncf %8 : vector<128x128xf32> to vector<128x128xbf16>
    %c128 = arith.constant 128 : index
    %c0_6 = arith.constant 0 : index
    %10 = vector.load %arg2[%c128, %c0_6] : memref<512x128xbf16, #tpu.memory_space<vmem>>, vector<128x128xbf16>
    %cst_7 = arith.constant dense<0.000000e+00> : vector<128x128xf32>
    %11 = tpu.matmul %9, %10, %cst_7 {dimension_numbers = #tpu.dot_dimension_numbers<[1], [0], [0], [1], [0, 0, 1, 1], [], []>} : vector<128x128xbf16>, vector<128x128xbf16>, vector<128x128xf32> -> vector<128x128xf32>
    %c1 = arith.constant 1 : index
    %c0_8 = arith.constant 0 : index
    %12 = vector.load %arg3[%c1, %c0_8] : memref<4x128xf32, #tpu.memory_space<vmem>>, vector<1x128xf32>
    %13 = vector.broadcast %12 : vector<1x128xf32> to vector<128x128xf32>
    %14 = arith.addf %11, %13 : vector<128x128xf32>
    %cst_9 = arith.constant 0.000000e+00 : f32
    %15 = vector.broadcast %cst_9 : f32 to vector<128x128xf32>
    %16 = arith.maximumf %14, %15 : vector<128x128xf32>
    %17 = arith.truncf %16 : vector<128x128xf32> to vector<128x128xbf16>
    %c256 = arith.constant 256 : index
    %c0_10 = arith.constant 0 : index
    %18 = vector.load %arg2[%c256, %c0_10] : memref<512x128xbf16, #tpu.memory_space<vmem>>, vector<128x128xbf16>
    %cst_11 = arith.constant dense<0.000000e+00> : vector<128x128xf32>
    %19 = tpu.matmul %17, %18, %cst_11 {dimension_numbers = #tpu.dot_dimension_numbers<[1], [0], [0], [1], [0, 0, 1, 1], [], []>} : vector<128x128xbf16>, vector<128x128xbf16>, vector<128x128xf32> -> vector<128x128xf32>
    %c2 = arith.constant 2 : index
    %c0_12 = arith.constant 0 : index
    %20 = vector.load %arg3[%c2, %c0_12] : memref<4x128xf32, #tpu.memory_space<vmem>>, vector<1x128xf32>
    %21 = vector.broadcast %20 : vector<1x128xf32> to vector<128x128xf32>
    %22 = arith.addf %19, %21 : vector<128x128xf32>
    %cst_13 = arith.constant 0.000000e+00 : f32
    %23 = vector.broadcast %cst_13 : f32 to vector<128x128xf32>
    %24 = arith.maximumf %22, %23 : vector<128x128xf32>
    %25 = arith.truncf %24 : vector<128x128xf32> to vector<128x128xbf16>
    %c384 = arith.constant 384 : index
    %c0_14 = arith.constant 0 : index
    %26 = vector.load %arg2[%c384, %c0_14] : memref<512x128xbf16, #tpu.memory_space<vmem>>, vector<128x128xbf16>
    %cst_15 = arith.constant dense<0.000000e+00> : vector<128x128xf32>
    %27 = tpu.matmul %25, %26, %cst_15 {dimension_numbers = #tpu.dot_dimension_numbers<[1], [0], [0], [1], [0, 0, 1, 1], [], []>} : vector<128x128xbf16>, vector<128x128xbf16>, vector<128x128xf32> -> vector<128x128xf32>
    %c3 = arith.constant 3 : index
    %c0_16 = arith.constant 0 : index
    %28 = vector.load %arg3[%c3, %c0_16] : memref<4x128xf32, #tpu.memory_space<vmem>>, vector<1x128xf32>
    %29 = vector.broadcast %28 : vector<1x128xf32> to vector<128x128xf32>
    %30 = arith.addf %27, %29 : vector<128x128xf32>
    %c0_17 = arith.constant 0 : index
    %c0_18 = arith.constant 0 : index
    %31 = vector.load %arg4[%c0_17, %c0_18] : memref<128x128xf32, #tpu.memory_space<vmem>>, vector<128x128xf32>
    tpu.vector_store %arg4[%c0_17, %c0_18], %30 {strides = array<i32>} : memref<128x128xf32, #tpu.memory_space<vmem>>, vector<128x128xf32>,
    return
  }
  func.func @transform_0(%arg0: i32) -> (i32, i32) {
    %c0_i32 = arith.constant 0 : i32
    %c0_i32_0 = arith.constant 0 : i32
    return %arg0, %c0_i32 : i32, i32
  }
  func.func @transform_1(%arg0: i32) -> (i32, i32) {
    %c0_i32 = arith.constant 0 : i32
    %c0_i32_0 = arith.constant 0 : i32
    %c0_i32_1 = arith.constant 0 : i32
    return %c0_i32, %c0_i32_0 : i32, i32
  }
  func.func @transform_2(%arg0: i32) -> (i32, i32) {
    %c0_i32 = arith.constant 0 : i32
    %c0_i32_0 = arith.constant 0 : i32
    %c0_i32_1 = arith.constant 0 : i32
    return %c0_i32, %c0_i32_0 : i32, i32
  }
  func.func @transform_3(%arg0: i32) -> (i32, i32) {
    %c0_i32 = arith.constant 0 : i32
    %c0_i32_0 = arith.constant 0 : i32
    return %arg0, %c0_i32 : i32, i32
  }
}

</mosaic_0001>

<llo_original>
// kernel: tpu_custom_call.1
$region0: #{tpu_custom_call.1}
  #allocation0 [shape = 'u32[]', space=smem, size = 0x4, offset = 0x4, fixed_abs, tag = 'smem constant byte address 0x4 - core index']
  #allocation1 [shape = 'u32[144,128]{1,0:T(1,128)}', space=vmem, size = 0x12000, scoped, tag = 'internal scratch']
  %s0 = inlined_call_operand.hbm [shape: f32[256,128], index: 0, kind: input, shape index: {}]
  %s1 = inlined_call_operand.hbm [shape: bf16[512,128], index: 1, kind: input, shape index: {}]
  %s2 = inlined_call_operand.vmem [shape: f32[4,128], index: 2, kind: input, shape index: {}]
  %s3 = inlined_call_operand.hbm [shape: f32[256,128], index: 3, kind: output, shape index: {}]
  %s4 = sld [smem:[#allocation0]]
  $region53: #{tpu_custom_call.1} parent=0
    _
  %s6 = ssub.s32 1, %s4
  %s7 = scalar_select 0, %s6, %s4
  $region1: #{tpu_custom_call.1} parent=0
    #allocation2 [shape = 'u8[131072]{0}', space=vmem, size = 0x20000, scoped, tag = 'input window, operand 0']
    #allocation3 [shape = 's32[2]{0}', space=sflag, size = 0x8, scoped, tag = 'scoped memory for tpu_custom_call.1']
    #allocation4 [shape = 's32[2]{0}', space=sflag, size = 0x8, scoped, tag = 'scoped memory for tpu_custom_call.1']
    #allocation5 [shape = 'u8[131072]{0}', space=vmem, size = 0x20000, scoped, tag = 'input window, operand 1, single buffered']
    #allocation6 [shape = 's32[1]{0}', space=sflag, size = 0x4, scoped, tag = 'scoped memory for tpu_custom_call.1']
    #allocation7 [shape = 'u8[131072]{0}', space=vmem, size = 0x20000, scoped, tag = 'output window, operand 0']
    %8 = vsyncpa [#allocation3], 0
    %s9 = scalar_lea.sflag [#allocation3], 1
    %10 = vsyncpa %s9, 0
    %11 = vsyncpa [#allocation6], 0
    %12 = vsyncpa [#allocation4], 0
    %s13 = scalar_lea.sflag [#allocation4], 1
    %14 = vsyncpa %s13, 0
    loop: start=0, step=1, limit=4
    $region2: #{tpu_custom_call.1} parent=1 // loop_pre_header
      _
    $region3: #{tpu_custom_call.1} parent=1 // loop_header
      %s16 = sphi 0, %s20
      %p17 = scmp.ge.s32.totalorder %s16, 4
      %s26 = sphi 0, %s28
      %s29 = sphi 0, %s26
      %s30 = sphi 0, %s29
      %s46 = sphi 0, %s30
      %s50 = sphi 0, %s50
      %s52 = sphi 0, %s50
      %s53 = sphi 0, %s52
      %s67 = sphi 0, %s53
      %s71 = sphi 0, %s71
      %s73 = sphi 0, %s71
      %s74 = sphi 0, %s73
      %s88 = sphi 0, %s74
      %s94 = sphi 0, %s96
      %s97 = sphi 0, %s94
      %s98 = sphi 0, %s97
      %s114 = sphi 0, %s98
    $region4: #{tpu_custom_call.1} parent=1 // loop_header_branch
      %19 = sbr.rel (%p17) target = $region8
    $region5: #{tpu_custom_call.1} parent=1 // loop_body
      %s21 = ssub.s32 %s16, 1
      %s22 = ssub.s32 %s16, 2
      %s23 = sadd.s32 %s16, 1
      %s24 = ssub.s32 %s16, %s23
      %p25 = scmp.eq.s32.totalorder %s24, 0
      %s27 = sadd.s32 %s26, 1
      %s28 = scalar_select %p25, %s26, %s27
      %p31 = pneg %p25
      %p32 = scmp.eq.s32.totalorder %s16, 1
      %p33 = por %p31, %p32
      %p34 = scmp.ne.s32.totalorder %s26, %s29
      %p35 = scmp.eq.s32.totalorder %s16, 0
      %p36 = por %p34, %p35
      %p37 = scmp.ne.s32.totalorder %s26, %s29
      %p38 = scmp.eq.s32.totalorder %s21, 1
      %p39 = por %p37, %p38
      %p40 = scmp.ne.s32.totalorder %s29, %s30
      %p41 = scmp.eq.s32.totalorder %s21, 0
      %p42 = por %p40, %p41
      %p43 = scmp.ne.s32.totalorder %s29, %s30
      %p44 = scmp.eq.s32.totalorder %s22, 1
      %p45 = por %p43, %p44
      %p47 = scmp.ne.s32.totalorder %s30, %s46
      %p48 = scmp.eq.s32.totalorder %s22, 0
      %p49 = por %p47, %p48
      %s51 = sadd.s32 %s50, 1
      %p54 = scmp.eq.s32.totalorder %s16, 1
      %p55 = scmp.ne.s32.totalorder %s50, %s52
      %p56 = scmp.eq.s32.totalorder %s16, 0
      %p57 = por %p55, %p56
      %p58 = scmp.ne.s32.totalorder %s50, %s52
      %p59 = scmp.eq.s32.totalorder %s21, 1
      %p60 = por %p58, %p59
      %p61 = scmp.ne.s32.totalorder %s52, %s53
      %p62 = scmp.eq.s32.totalorder %s21, 0
      %p63 = por %p61, %p62
      %p64 = scmp.ne.s32.totalorder %s52, %s53
      %p65 = scmp.eq.s32.totalorder %s22, 1
      %p66 = por %p64, %p65
      %p68 = scmp.ne.s32.totalorder %s53, %s67
      %p69 = scmp.eq.s32.totalorder %s22, 0
      %p70 = por %p68, %p69
      %s72 = sadd.s32 %s71, 1
      %p75 = scmp.eq.s32.totalorder %s16, 1
      %p76 = scmp.ne.s32.totalorder %s71, %s73
      %p77 = scmp.eq.s32.totalorder %s16, 0
      %p78 = por %p76, %p77
      %p79 = scmp.ne.s32.totalorder %s71, %s73
      %p80 = scmp.eq.s32.totalorder %s21, 1
      %p81 = por %p79, %p80
      %p82 = scmp.ne.s32.totalorder %s73, %s74
      %p83 = scmp.eq.s32.totalorder %s21, 0
      %p84 = por %p82, %p83
      %p85 = scmp.ne.s32.totalorder %s73, %s74
      %p86 = scmp.eq.s32.totalorder %s22, 1
      %p87 = por %p85, %p86
      %p89 = scmp.ne.s32.totalorder %s74, %s88
      %p90 = scmp.eq.s32.totalorder %s22, 0
      %p91 = por %p89, %p90
      %s92 = ssub.s32 %s16, %s23
      %p93 = scmp.eq.s32.totalorder %s92, 0
      %s95 = sadd.s32 %s94, 1
      %s96 = scalar_select %p93, %s94, %s95
      %p99 = pneg %p93
      %p100 = scmp.eq.s32.totalorder %s16, 1
      %p101 = por %p99, %p100
      %p102 = scmp.ne.s32.totalorder %s94, %s97
      %p103 = scmp.eq.s32.totalorder %s16, 0
      %p104 = por %p102, %p103
      %p105 = scmp.ne.s32.totalorder %s94, %s97
      %p106 = scmp.eq.s32.totalorder %s21, 1
      %p107 = por %p105, %p106
      %p108 = scmp.ne.s32.totalorder %s97, %s98
      %p109 = scmp.eq.s32.totalorder %s21, 0
      %p110 = por %p108, %p109
      %p111 = scmp.ne.s32.totalorder %s97, %s98
      %p112 = scmp.eq.s32.totalorder %s22, 1
      %p113 = por %p111, %p112
      %p115 = scmp.ne.s32.totalorder %s98, %s114
      %p116 = scmp.eq.s32.totalorder %s22, 0
      %p117 = por %p115, %p116
      %p118 = scmp.le.s32.totalorder 1, %s16
      %p119 = scmp.lt.s32.totalorder %s16, 3
      %p120 = pnand %p118, %p119
      %p121 = pneg %p120
      // Predicated region
      $region9: #{tpu_custom_call.1} parent=5 // pred_check
        _
      $region10: #{tpu_custom_call.1} parent=5 // pred_check_branch
        %123 = sbr.rel (%p120) target = $region12
      $region11: #{tpu_custom_call.1} parent=5 // pred_region
        %s124 = ssub.s32 %s16, 1
        // Predicated region
        $region13: #{tpu_custom_call.1} parent=11 // pred_check
          %p125 = pneg %p63
        $region14: #{tpu_custom_call.1} parent=11 // pred_check_branch
          %127 = sbr.rel (%p125) target = $region16
        $region15: #{tpu_custom_call.1} parent=11 // pred_region
          %s129 = ssub.s32 4096, 4096
          %130 = vsyncadd [#allocation6], %s129
          %s131 = sshll.u32 [#allocation5], 4
          %s132 = int_to_ptr.vmem [resolvable:$true] %s131
          %137 = dma.hbm_to_vmem [thread:$0]  %s1, 4096, %s132, [#allocation6], 64, 64, 4
        $region16: #{tpu_custom_call.1} parent=11 // pred_fallthru
          _
        // Predicated region
        $region17: #{tpu_custom_call.1} parent=11 // pred_check
          %p138 = pneg %p84
        $region18: #{tpu_custom_call.1} parent=11 // pred_check_branch
          %140 = sbr.rel (%p138) target = $region20
        $region19: #{tpu_custom_call.1} parent=11 // pred_region
          _
        $region20: #{tpu_custom_call.1} parent=11 // pred_fallthru
          _
      $region12: #{tpu_custom_call.1} parent=5 // pred_fallthru
        _
      %p141 = scmp.lt.s32.totalorder %s16, 2
      // Predicated region
      $region21: #{tpu_custom_call.1} parent=5 // pred_check
        %p142 = pneg %p141
      $region22: #{tpu_custom_call.1} parent=5 // pred_check_branch
        %144 = sbr.rel (%p142) target = $region24
      $region23: #{tpu_custom_call.1} parent=5 // pred_region
        // Predicated region
        $region25: #{tpu_custom_call.1} parent=23 // pred_check
          %p145 = pneg %p36
        $region26: #{tpu_custom_call.1} parent=23 // pred_check_branch
          %147 = sbr.rel (%p145) target = $region28
        $region27: #{tpu_custom_call.1} parent=23 // pred_region
          %s148 = sand.u32 %s26, 1
          %s149 = scalar_lea.sflag [#allocation3], %s148
          %s150 = sand.u32 %s26, 1
          %s151 = smul.addr %s150, 128
          %s152 = scalar_lea.vmem [#allocation2], %s151
          %s153 = smul.u32 16, %s16
          %s155 = ssub.s32 2048, 2048
          %156 = vsyncadd %s149, %s155
          %s157 = smul.addr %s153, 128
          %s158 = scalar_lea.hbm %s0, %s157
          %s159 = sshll.u32 %s152, 4
          %s160 = int_to_ptr.vmem [resolvable:$true] %s159
          %165 = dma.hbm_to_vmem [thread:$0]  %s158, 2048, %s160, %s149, 128, 128, 8
        $region28: #{tpu_custom_call.1} parent=23 // pred_fallthru
          _
      $region24: #{tpu_custom_call.1} parent=5 // pred_fallthru
        _
      %p166 = scmp.le.s32.totalorder 1, %s16
      %p167 = scmp.lt.s32.totalorder %s16, 3
      %p168 = pnand %p166, %p167
      %p169 = pneg %p168
      // Predicated region
      $region29: #{tpu_custom_call.1} parent=5 // pred_check
        _
      $region30: #{tpu_custom_call.1} parent=5 // pred_check_branch
        %171 = sbr.rel (%p168) target = $region32
      $region31: #{tpu_custom_call.1} parent=5 // pred_region
        %s172 = ssub.s32 %s16, 1
        %s173 = sand.u32 %s29, 1
        %s174 = scalar_lea.sflag [#allocation3], %s173
        %s175 = sand.u32 %s29, 1
        %s176 = smul.addr %s175, 128
        %s177 = scalar_lea.vmem [#allocation2], %s176
        // Predicated region
        $region33: #{tpu_custom_call.1} parent=31 // pred_check
          %p178 = pneg %p42
        $region34: #{tpu_custom_call.1} parent=31 // pred_check_branch
          %180 = sbr.rel (%p178) target = $region36
        $region35: #{tpu_custom_call.1} parent=31 // pred_region
          %181 = dma.done %s174, 2048
        $region36: #{tpu_custom_call.1} parent=31 // pred_fallthru
          _
        // Predicated region
        $region37: #{tpu_custom_call.1} parent=31 // pred_check
          %p182 = pneg %p63
        $region38: #{tpu_custom_call.1} parent=31 // pred_check_branch
          %184 = sbr.rel (%p182) target = $region40
        $region39: #{tpu_custom_call.1} parent=31 // pred_region
          %185 = dma.done [#allocation6], 4096
        $region40: #{tpu_custom_call.1} parent=31 // pred_fallthru
          _
        %s186 = sand.u32 %s29, 1
        %s187 = scalar_lea.sflag [#allocation3], %s186
        %s188 = sand.u32 %s29, 1
        %s189 = smul.addr %s188, 128
        %s190 = scalar_lea.vmem [#allocation2], %s189
        %p191 = pneg %p42
        %p192 = pneg %p39
        %p193 = pneg %p63
        %p194 = pneg %p60
        %p195 = pneg %p84
        %p196 = pneg %p81
        %p197 = pneg %p110
        %p198 = pneg %p107
        %s199 = sand.u32 %s97, 1
        %s200 = scalar_lea.sflag [#allocation4], %s199
        %s201 = sand.u32 %s97, 1
        %s202 = smul.addr %s201, 128
        %s203 = scalar_lea.vmem [#allocation7], %s202
        %s204 = smul.u32 16, %s21
        %s205 = smul.u32 16, %s21
        %v207 = vld [vmem:[%s177] sm:$0xff]
        %v208 = vld [vmem:[%s177 + $0x8] sm:$0xff]
        %v209 = vld [vmem:[%s177 + $0x10] sm:$0xff]
        %v210 = vld [vmem:[%s177 + $0x18] sm:$0xff]
        %v211 = vld [vmem:[%s177 + $0x20] sm:$0xff]
        %v212 = vld [vmem:[%s177 + $0x28] sm:$0xff]
        %v213 = vld [vmem:[%s177 + $0x30] sm:$0xff]
        %v214 = vld [vmem:[%s177 + $0x38] sm:$0xff]
        %v215 = vld [vmem:[%s177 + $0x40] sm:$0xff]
        %v216 = vld [vmem:[%s177 + $0x48] sm:$0xff]
        %v217 = vld [vmem:[%s177 + $0x50] sm:$0xff]
        %v218 = vld [vmem:[%s177 + $0x58] sm:$0xff]
        %v219 = vld [vmem:[%s177 + $0x60] sm:$0xff]
        %v220 = vld [vmem:[%s177 + $0x68] sm:$0xff]
        %v221 = vld [vmem:[%s177 + $0x70] sm:$0xff]
        %v222 = vld [vmem:[%s177 + $0x78] sm:$0xff]
        %v223 = vpack.c.bf16 %v208, %v207
        %v224 = vpack.c.bf16 %v210, %v209
        %v225 = vpack.c.bf16 %v212, %v211
        %v226 = vpack.c.bf16 %v214, %v213
        %v227 = vpack.c.bf16 %v216, %v215
        %v228 = vpack.c.bf16 %v218, %v217
        %v229 = vpack.c.bf16 %v220, %v219
        %v230 = vpack.c.bf16 %v222, %v221
        %v231 = vld [vmem:[#allocation5] sm:$0xf]
        %v232 = vld [vmem:[#allocation5 + $0x4] sm:$0xf]
        %v233 = vld [vmem:[#allocation5 + $0x8] sm:$0xf]
        %v234 = vld [vmem:[#allocation5 + $0xc] sm:$0xf]
        %v235 = vld [vmem:[#allocation5 + $0x10] sm:$0xf]
        %v236 = vld [vmem:[#allocation5 + $0x14] sm:$0xf]
        %v237 = vld [vmem:[#allocation5 + $0x18] sm:$0xf]
        %v238 = vld [vmem:[#allocation5 + $0x1c] sm:$0xf]
        %v239 = vld [vmem:[#allocation5 + $0x20] sm:$0xf]
        %v240 = vld [vmem:[#allocation5 + $0x24] sm:$0xf]
        %v241 = vld [vmem:[#allocation5 + $0x28] sm:$0xf]
        %v242 = vld [vmem:[#allocation5 + $0x2c] sm:$0xf]
        %v243 = vld [vmem:[#allocation5 + $0x30] sm:$0xf]
        %v244 = vld [vmem:[#allocation5 + $0x34] sm:$0xf]
        %v245 = vld [vmem:[#allocation5 + $0x38] sm:$0xf]
        %v246 = vld [vmem:[#allocation5 + $0x3c] sm:$0xf]
        %v247 = vld [vmem:[%s2] sm:$0x1]
        %v248 = vlaneseq
        %v249 = vshrl.u32 %v248, 7
        %v250 = vsub.s32 0, %v249
        %v251 = vrot.slane %v247, %v250
        %v268 = vunpack.c.l.b16 %v231
        %v269 = vunpack.c.l.b16 %v232
        %v270 = vunpack.c.l.b16 %v233
        %v271 = vunpack.c.l.b16 %v234
        %v272 = vunpack.c.l.b16 %v235
        %v273 = vunpack.c.l.b16 %v236
        %v274 = vunpack.c.l.b16 %v237
        %v275 = vunpack.c.l.b16 %v238
        %v276 = vunpack.c.l.b16 %v239
        %v277 = vunpack.c.l.b16 %v240
        %v278 = vunpack.c.l.b16 %v241
        %v279 = vunpack.c.l.b16 %v242
        %v280 = vunpack.c.l.b16 %v243
        %v281 = vunpack.c.l.b16 %v244
        %v282 = vunpack.c.l.b16 %v245
        %v283 = vunpack.c.l.b16 %v246
        %v284 = vpack.c.b16 %v269, %v268
        %v285 = vpack.c.b16 %v271, %v270
        %v286 = vpack.c.b16 %v273, %v272
        %v287 = vpack.c.b16 %v275, %v274
        %v288 = vpack.c.b16 %v277, %v276
        %v289 = vpack.c.b16 %v279, %v278
        %v290 = vpack.c.b16 %v281, %v280
        %v291 = vpack.c.b16 %v283, %v282
        %300 = vmatprep.subr.bf16.mxu0 0
        %301 = vmatpush1.bf16.msra.mxu0 %v284
        %302 = vmatprep.subr.bf16.mxu0 0
        %303 = vmatpush1.bf16.msra.mxu0 %v285
        %304 = vmatprep.subr.bf16.mxu0 0
        %305 = vmatpush1.bf16.msra.mxu0 %v286
        %306 = vmatprep.subr.bf16.mxu0 0
        %307 = vmatpush1.bf16.msra.mxu0 %v287
        %308 = vmatprep.subr.bf16.mxu0 0
        %309 = vmatpush1.bf16.msra.mxu0 %v288
        %310 = vmatprep.subr.bf16.mxu0 0
        %311 = vmatpush1.bf16.msra.mxu0 %v289
        %312 = vmatprep.subr.bf16.mxu0 0
        %313 = vmatpush1.bf16.msra.mxu0 %v290
        %314 = vmatprep.subr.bf16.mxu0 0
        %315 = vmatpush1.bf16.msra.mxu0 %v291
        %316 = vmatprep.subr.bf16.mxu0 0
        %317 = vmatpush1.bf16.msra.mxu0 0
        %318 = vmatprep.subr.bf16.mxu0 0
        %319 = vmatpush1.bf16.msra.mxu0 0
        %320 = vmatprep.subr.bf16.mxu0 0
        %321 = vmatpush1.bf16.msra.mxu0 0
        %322 = vmatprep.subr.bf16.mxu0 0
        %323 = vmatpush1.bf16.msra.mxu0 0
        %324 = vmatprep.subr.bf16.mxu0 0
        %325 = vmatpush1.bf16.msra.mxu0 0
        %326 = vmatprep.subr.bf16.mxu0 0
        %327 = vmatpush1.bf16.msra.mxu0 0
        %328 = vmatprep.subr.bf16.mxu0 0
        %329 = vmatpush1.bf16.msra.mxu0 0
        %330 = vmatprep.subr.bf16.mxu0 0
        %331 = vmatpush1.bf16.msra.mxu0 0
        %332 = vmatprep.mubr.bf16.mxu0 0
        %333 = vmatmul.mubr.bf16.gmra.mrb[0].mxu0 %v223
        %v334 = vpop.f32.mrb[0].mxu0
        %v335 = vadd.f32 %v251, %v334
        %v336 = vpop.f32.mrb[0].mxu0
        %v337 = vpop.f32.mrb[0].mxu0
        %v338 = vadd.f32 %v251, %v337
        %v339 = vpop.f32.mrb[0].mxu0
        %340 = vmatprep.mubr.bf16.mxu0 0
        %341 = vmatmul.mubr.bf16.gmra.mrb[0].mxu0 %v224
        %v342 = vpop.f32.mrb[0].mxu0
        %v343 = vadd.f32 %v251, %v342
        %v344 = vpop.f32.mrb[0].mxu0
        %v345 = vpop.f32.mrb[0].mxu0
        %v346 = vadd.f32 %v251, %v345
        %v347 = vpop.f32.mrb[0].mxu0
        %348 = vmatprep.mubr.bf16.mxu0 0
        %349 = vmatmul.mubr.bf16.gmra.mrb[0].mxu0 %v225
        %v350 = vpop.f32.mrb[0].mxu0
        %v351 = vadd.f32 %v251, %v350
        %v352 = vpop.f32.mrb[0].mxu0
        %v353 = vpop.f32.mrb[0].mxu0
        %v354 = vadd.f32 %v251, %v353
        %v355 = vpop.f32.mrb[0].mxu0
        %356 = vmatprep.mubr.bf16.mxu0 0
        %357 = vmatmul.mubr.bf16.gmra.mrb[0].mxu0 %v226
        %v358 = vpop.f32.mrb[0].mxu0
        %v359 = vadd.f32 %v251, %v358
        %v360 = vpop.f32.mrb[0].mxu0
        %v361 = vpop.f32.mrb[0].mxu0
        %v362 = vadd.f32 %v251, %v361
        %v363 = vpop.f32.mrb[0].mxu0
        %364 = vmatprep.mubr.bf16.mxu0 0
        %365 = vmatmul.mubr.bf16.gmra.mrb[0].mxu0 %v227
        %v366 = vpop.f32.mrb[0].mxu0
        %v367 = vadd.f32 %v251, %v366
        %v368 = vpop.f32.mrb[0].mxu0
        %v369 = vpop.f32.mrb[0].mxu0
        %v370 = vadd.f32 %v251, %v369
        %v371 = vpop.f32.mrb[0].mxu0
        %372 = vmatprep.mubr.bf16.mxu0 0
        %373 = vmatmul.mubr.bf16.gmra.mrb[0].mxu0 %v228
        %v374 = vpop.f32.mrb[0].mxu0
        %v375 = vadd.f32 %v251, %v374
        %v376 = vpop.f32.mrb[0].mxu0
        %v377 = vpop.f32.mrb[0].mxu0
        %v378 = vadd.f32 %v251, %v377
        %v379 = vpop.f32.mrb[0].mxu0
        %380 = vmatprep.mubr.bf16.mxu0 0
        %381 = vmatmul.mubr.bf16.gmra.mrb[0].mxu0 %v229
        %v382 = vpop.f32.mrb[0].mxu0
        %v383 = vadd.f32 %v251, %v382
        %v384 = vpop.f32.mrb[0].mxu0
        %v385 = vpop.f32.mrb[0].mxu0
        %v386 = vadd.f32 %v251, %v385
        %v387 = vpop.f32.mrb[0].mxu0
        %388 = vmatprep.mubr.bf16.mxu0 0
        %389 = vmatmul.mubr.bf16.gmra.mrb[0].mxu0 %v230
        %v390 = vpop.f32.mrb[0].mxu0
        %v391 = vadd.f32 %v251, %v390
        %v392 = vpop.f32.mrb[0].mxu0
        %v393 = vpop.f32.mrb[0].mxu0
        %v394 = vadd.f32 %v251, %v393
        %v395 = vpop.f32.mrb[0].mxu0
        %396 = vdwg.mxu0
        %v397 = vmax.f32 %v335, 0.0
        %v398 = vmax.f32 %v338, 0.0
        %v399 = vmax.f32 %v343, 0.0
        %v400 = vmax.f32 %v346, 0.0
        %v401 = vmax.f32 %v351, 0.0
        %v402 = vmax.f32 %v354, 0.0
        %v403 = vmax.f32 %v359, 0.0
        %v404 = vmax.f32 %v362, 0.0
        %v405 = vmax.f32 %v367, 0.0
        %v406 = vmax.f32 %v370, 0.0
        %v407 = vmax.f32 %v375, 0.0
        %v408 = vmax.f32 %v378, 0.0
        %v409 = vmax.f32 %v383, 0.0
        %v410 = vmax.f32 %v386, 0.0
        %v411 = vmax.f32 %v391, 0.0
        %v412 = vmax.f32 %v394, 0.0
        %v413 = vpack.c.bf16 %v398, %v397
        %v414 = vpack.c.bf16 %v400, %v399
        %v415 = vpack.c.bf16 %v402, %v401
        %v416 = vpack.c.bf16 %v404, %v403
        %v417 = vpack.c.bf16 %v406, %v405
        %v418 = vpack.c.bf16 %v408, %v407
        %v419 = vpack.c.bf16 %v410, %v409
        %v420 = vpack.c.bf16 %v412, %v411
        %v421 = vld [vmem:[#allocation5 + $0x40] sm:$0xf]
        %v422 = vld [vmem:[#allocation5 + $0x44] sm:$0xf]
        %v423 = vld [vmem:[#allocation5 + $0x48] sm:$0xf]
        %v424 = vld [vmem:[#allocation5 + $0x4c] sm:$0xf]
        %v425 = vld [vmem:[#allocation5 + $0x50] sm:$0xf]
        %v426 = vld [vmem:[#allocation5 + $0x54] sm:$0xf]
        %v427 = vld [vmem:[#allocation5 + $0x58] sm:$0xf]
        %v428 = vld [vmem:[#allocation5 + $0x5c] sm:$0xf]
        %v429 = vld [vmem:[#allocation5 + $0x60] sm:$0xf]
        %v430 = vld [vmem:[#allocation5 + $0x64] sm:$0xf]
        %v431 = vld [vmem:[#allocation5 + $0x68] sm:$0xf]
        %v432 = vld [vmem:[#allocation5 + $0x6c] sm:$0xf]
        %v433 = vld [vmem:[#allocation5 + $0x70] sm:$0xf]
        %v434 = vld [vmem:[#allocation5 + $0x74] sm:$0xf]
        %v435 = vld [vmem:[#allocation5 + $0x78] sm:$0xf]
        %v436 = vld [vmem:[#allocation5 + $0x7c] sm:$0xf]
        %v437 = vld [vmem:[%s2 + $0x1] sm:$0x1]
        %v438 = vlaneseq
        %v439 = vshrl.u32 %v438, 7
        %v440 = vsub.s32 0, %v439
        %v441 = vrot.slane %v437, %v440
        %v458 = vunpack.c.l.b16 %v421
        %v459 = vunpack.c.l.b16 %v422
        %v460 = vunpack.c.l.b16 %v423
        %v461 = vunpack.c.l.b16 %v424
        %v462 = vunpack.c.l.b16 %v425
        %v463 = vunpack.c.l.b16 %v426
        %v464 = vunpack.c.l.b16 %v427
        %v465 = vunpack.c.l.b16 %v428
        %v466 = vunpack.c.l.b16 %v429
        %v467 = vunpack.c.l.b16 %v430
        %v468 = vunpack.c.l.b16 %v431
        %v469 = vunpack.c.l.b16 %v432
        %v470 = vunpack.c.l.b16 %v433
        %v471 = vunpack.c.l.b16 %v434
        %v472 = vunpack.c.l.b16 %v435
        %v473 = vunpack.c.l.b16 %v436
        %v474 = vpack.c.b16 %v459, %v458
        %v475 = vpack.c.b16 %v461, %v460
        %v476 = vpack.c.b16 %v463, %v462
        %v477 = vpack.c.b16 %v465, %v464
        %v478 = vpack.c.b16 %v467, %v466
        %v479 = vpack.c.b16 %v469, %v468
        %v480 = vpack.c.b16 %v471, %v470
        %v481 = vpack.c.b16 %v473, %v472
        %490 = vmatprep.subr.bf16.mxu0 0
        %491 = vmatpush1.bf16.msra.mxu0 %v474
        %492 = vmatprep.subr.bf16.mxu0 0
        %493 = vmatpush1.bf16.msra.mxu0 %v475
        %494 = vmatprep.subr.bf16.mxu0 0
        %495 = vmatpush1.bf16.msra.mxu0 %v476
        %496 = vmatprep.subr.bf16.mxu0 0
        %497 = vmatpush1.bf16.msra.mxu0 %v477
        %498 = vmatprep.subr.bf16.mxu0 0
        %499 = vmatpush1.bf16.msra.mxu0 %v478
        %500 = vmatprep.subr.bf16.mxu0 0
        %501 = vmatpush1.bf16.msra.mxu0 %v479
        %502 = vmatprep.subr.bf16.mxu0 0
        %503 = vmatpush1.bf16.msra.mxu0 %v480
        %504 = vmatprep.subr.bf16.mxu0 0
        %505 = vmatpush1.bf16.msra.mxu0 %v481
        %506 = vmatprep.subr.bf16.mxu0 0
        %507 = vmatpush1.bf16.msra.mxu0 0
        %508 = vmatprep.subr.bf16.mxu0 0
        %509 = vmatpush1.bf16.msra.mxu0 0
        %510 = vmatprep.subr.bf16.mxu0 0
        %511 = vmatpush1.bf16.msra.mxu0 0
        %512 = vmatprep.subr.bf16.mxu0 0
        %513 = vmatpush1.bf16.msra.mxu0 0
        %514 = vmatprep.subr.bf16.mxu0 0
        %515 = vmatpush1.bf16.msra.mxu0 0
        %516 = vmatprep.subr.bf16.mxu0 0
        %517 = vmatpush1.bf16.msra.mxu0 0
        %518 = vmatprep.subr.bf16.mxu0 0
        %519 = vmatpush1.bf16.msra.mxu0 0
        %520 = vmatprep.subr.bf16.mxu0 0
        %521 = vmatpush1.bf16.msra.mxu0 0
        %522 = vmatprep.mubr.bf16.mxu0 0
        %523 = vmatmul.mubr.bf16.gmra.mrb[0].mxu0 %v413
        %v524 = vpop.f32.mrb[0].mxu0
        %v525 = vadd.f32 %v441, %v524
        %v526 = vpop.f32.mrb[0].mxu0
        %v527 = vpop.f32.mrb[0].mxu0
        %v528 = vadd.f32 %v441, %v527
        %v529 = vpop.f32.mrb[0].mxu0
        %530 = vmatprep.mubr.bf16.mxu0 0
        %531 = vmatmul.mubr.bf16.gmra.mrb[0].mxu0 %v414
        %v532 = vpop.f32.mrb[0].mxu0
        %v533 = vadd.f32 %v441, %v532
        %v534 = vpop.f32.mrb[0].mxu0
        %v535 = vpop.f32.mrb[0].mxu0
        %v536 = vadd.f32 %v441, %v535
        %v537 = vpop.f32.mrb[0].mxu0
        %538 = vmatprep.mubr.bf16.mxu0 0
        %539 = vmatmul.mubr.bf16.gmra.mrb[0].mxu0 %v415
        %v540 = vpop.f32.mrb[0].mxu0
        %v541 = vadd.f32 %v441, %v540
        %v542 = vpop.f32.mrb[0].mxu0
        %v543 = vpop.f32.mrb[0].mxu0
        %v544 = vadd.f32 %v441, %v543
        %v545 = vpop.f32.mrb[0].mxu0
        %546 = vmatprep.mubr.bf16.mxu0 0
        %547 = vmatmul.mubr.bf16.gmra.mrb[0].mxu0 %v416
        %v548 = vpop.f32.mrb[0].mxu0
        %v549 = vadd.f32 %v441, %v548
        %v550 = vpop.f32.mrb[0].mxu0
        %v551 = vpop.f32.mrb[0].mxu0
        %v552 = vadd.f32 %v441, %v551
        %v553 = vpop.f32.mrb[0].mxu0
        %554 = vmatprep.mubr.bf16.mxu0 0
        %555 = vmatmul.mubr.bf16.gmra.mrb[0].mxu0 %v417
        %v556 = vpop.f32.mrb[0].mxu0
        %v557 = vadd.f32 %v441, %v556
        %v558 = vpop.f32.mrb[0].mxu0
        %v559 = vpop.f32.mrb[0].mxu0
        %v560 = vadd.f32 %v441, %v559
        %v561 = vpop.f32.mrb[0].mxu0
        %562 = vmatprep.mubr.bf16.mxu0 0
        %563 = vmatmul.mubr.bf16.gmra.mrb[0].mxu0 %v418
        %v564 = vpop.f32.mrb[0].mxu0
        %v565 = vadd.f32 %v441, %v564
        %v566 = vpop.f32.mrb[0].mxu0
        %v567 = vpop.f32.mrb[0].mxu0
        %v568 = vadd.f32 %v441, %v567
        %v569 = vpop.f32.mrb[0].mxu0
        %570 = vmatprep.mubr.bf16.mxu0 0
        %571 = vmatmul.mubr.bf16.gmra.mrb[0].mxu0 %v419
        %v572 = vpop.f32.mrb[0].mxu0
        %v573 = vadd.f32 %v441, %v572
        %v574 = vpop.f32.mrb[0].mxu0
        %v575 = vpop.f32.mrb[0].mxu0
        %v576 = vadd.f32 %v441, %v575
        %v577 = vpop.f32.mrb[0].mxu0
        %578 = vmatprep.mubr.bf16.mxu0 0
        %579 = vmatmul.mubr.bf16.gmra.mrb[0].mxu0 %v420
        %v580 = vpop.f32.mrb[0].mxu0
        %v581 = vadd.f32 %v441, %v580
        %v582 = vpop.f32.mrb[0].mxu0
        %v583 = vpop.f32.mrb[0].mxu0
        %v584 = vadd.f32 %v441, %v583
        %v585 = vpop.f32.mrb[0].mxu0
        %586 = vdwg.mxu0
        %v587 = vmax.f32 %v525, 0.0
        %v588 = vmax.f32 %v528, 0.0
        %v589 = vmax.f32 %v533, 0.0
        %v590 = vmax.f32 %v536, 0.0
        %v591 = vmax.f32 %v541, 0.0
        %v592 = vmax.f32 %v544, 0.0
        %v593 = vmax.f32 %v549, 0.0
        %v594 = vmax.f32 %v552, 0.0
        %v595 = vmax.f32 %v557, 0.0
        %v596 = vmax.f32 %v560, 0.0
        %v597 = vmax.f32 %v565, 0.0
        %v598 = vmax.f32 %v568, 0.0
        %v599 = vmax.f32 %v573, 0.0
        %v600 = vmax.f32 %v576, 0.0
        %v601 = vmax.f32 %v581, 0.0
        %v602 = vmax.f32 %v584, 0.0
        %v603 = vpack.c.bf16 %v588, %v587
        %v604 = vpack.c.bf16 %v590, %v589
        %v605 = vpack.c.bf16 %v592, %v591
        %v606 = vpack.c.bf16 %v594, %v593
        %v607 = vpack.c.bf16 %v596, %v595
        %v608 = vpack.c.bf16 %v598, %v597
        %v609 = vpack.c.bf16 %v600, %v599
        %v610 = vpack.c.bf16 %v602, %v601
        %v611 = vld [vmem:[#allocation5 + $0x80] sm:$0xf]
        %v612 = vld [vmem:[#allocation5 + $0x84] sm:$0xf]
        %v613 = vld [vmem:[#allocation5 + $0x88] sm:$0xf]
        %v614 = vld [vmem:[#allocation5 + $0x8c] sm:$0xf]
        %v615 = vld [vmem:[#allocation5 + $0x90] sm:$0xf]
        %v616 = vld [vmem:[#allocation5 + $0x94] sm:$0xf]
        %v617 = vld [vmem:[#allocation5 + $0x98] sm:$0xf]
        %v618 = vld [vmem:[#allocation5 + $0x9c] sm:$0xf]
        %v619 = vld [vmem:[#allocation5 + $0xa0] sm:$0xf]
        %v620 = vld [vmem:[#allocation5 + $0xa4] sm:$0xf]
        %v621 = vld [vmem:[#allocation5 + $0xa8] sm:$0xf]
        %v622 = vld [vmem:[#allocation5 + $0xac] sm:$0xf]
        %v623 = vld [vmem:[#allocation5 + $0xb0] sm:$0xf]
        %v624 = vld [vmem:[#allocation5 + $0xb4] sm:$0xf]
        %v625 = vld [vmem:[#allocation5 + $0xb8] sm:$0xf]
        %v626 = vld [vmem:[#allocation5 + $0xbc] sm:$0xf]
        %v627 = vld [vmem:[%s2 + $0x2] sm:$0x1]
        %v628 = vlaneseq
        %v629 = vshrl.u32 %v628, 7
        %v630 = vsub.s32 0, %v629
        %v631 = vrot.slane %v627, %v630
        %v648 = vunpack.c.l.b16 %v611
        %v649 = vunpack.c.l.b16 %v612
        %v650 = vunpack.c.l.b16 %v613
        %v651 = vunpack.c.l.b16 %v614
        %v652 = vunpack.c.l.b16 %v615
        %v653 = vunpack.c.l.b16 %v616
        %v654 = vunpack.c.l.b16 %v617
        %v655 = vunpack.c.l.b16 %v618
        %v656 = vunpack.c.l.b16 %v619
        %v657 = vunpack.c.l.b16 %v620
        %v658 = vunpack.c.l.b16 %v621
        %v659 = vunpack.c.l.b16 %v622
        %v660 = vunpack.c.l.b16 %v623
        %v661 = vunpack.c.l.b16 %v624
        %v662 = vunpack.c.l.b16 %v625
        %v663 = vunpack.c.l.b16 %v626
        %v664 = vpack.c.b16 %v649, %v648
        %v665 = vpack.c.b16 %v651, %v650
        %v666 = vpack.c.b16 %v653, %v652
        %v667 = vpack.c.b16 %v655, %v654
        %v668 = vpack.c.b16 %v657, %v656
        %v669 = vpack.c.b16 %v659, %v658
        %v670 = vpack.c.b16 %v661, %v660
        %v671 = vpack.c.b16 %v663, %v662
        %680 = vmatprep.subr.bf16.mxu0 0
        %681 = vmatpush1.bf16.msra.mxu0 %v664
        %682 = vmatprep.subr.bf16.mxu0 0
        %683 = vmatpush1.bf16.msra.mxu0 %v665
        %684 = vmatprep.subr.bf16.mxu0 0
        %685 = vmatpush1.bf16.msra.mxu0 %v666
        %686 = vmatprep.subr.bf16.mxu0 0
        %687 = vmatpush1.bf16.msra.mxu0 %v667
        %688 = vmatprep.subr.bf16.mxu0 0
        %689 = vmatpush1.bf16.msra.mxu0 %v668
        %690 = vmatprep.subr.bf16.mxu0 0
        %691 = vmatpush1.bf16.msra.mxu0 %v669
        %692 = vmatprep.subr.bf16.mxu0 0
        %693 = vmatpush1.bf16.msra.mxu0 %v670
        %694 = vmatprep.subr.bf16.mxu0 0
        %695 = vmatpush1.bf16.msra.mxu0 %v671
        %696 = vmatprep.subr.bf16.mxu0 0
        %697 = vmatpush1.bf16.msra.mxu0 0
        %698 = vmatprep.subr.bf16.mxu0 0
        %699 = vmatpush1.bf16.msra.mxu0 0
        %700 = vmatprep.subr.bf16.mxu0 0
        %701 = vmatpush1.bf16.msra.mxu0 0
        %702 = vmatprep.subr.bf16.mxu0 0
        %703 = vmatpush1.bf16.msra.mxu0 0
        %704 = vmatprep.subr.bf16.mxu0 0
        %705 = vmatpush1.bf16.msra.mxu0 0
        %706 = vmatprep.subr.bf16.mxu0 0
        %707 = vmatpush1.bf16.msra.mxu0 0
        %708 = vmatprep.subr.bf16.mxu0 0
        %709 = vmatpush1.bf16.msra.mxu0 0
        %710 = vmatprep.subr.bf16.mxu0 0
        %711 = vmatpush1.bf16.msra.mxu0 0
        %712 = vmatprep.mubr.bf16.mxu0 0
        %713 = vmatmul.mubr.bf16.gmra.mrb[0].mxu0 %v603
        %v714 = vpop.f32.mrb[0].mxu0
        %v715 = vadd.f32 %v631, %v714
        %v716 = vpop.f32.mrb[0].mxu0
        %v717 = vpop.f32.mrb[0].mxu0
        %v718 = vadd.f32 %v631, %v717
        %v719 = vpop.f32.mrb[0].mxu0
        %720 = vmatprep.mubr.bf16.mxu0 0
        %721 = vmatmul.mubr.bf16.gmra.mrb[0].mxu0 %v604
        %v722 = vpop.f32.mrb[0].mxu0
        %v723 = vadd.f32 %v631, %v722
        %v724 = vpop.f32.mrb[0].mxu0
        %v725 = vpop.f32.mrb[0].mxu0
        %v726 = vadd.f32 %v631, %v725
        %v727 = vpop.f32.mrb[0].mxu0
        %728 = vmatprep.mubr.bf16.mxu0 0
        %729 = vmatmul.mubr.bf16.gmra.mrb[0].mxu0 %v605
        %v730 = vpop.f32.mrb[0].mxu0
        %v731 = vadd.f32 %v631, %v730
        %v732 = vpop.f32.mrb[0].mxu0
        %v733 = vpop.f32.mrb[0].mxu0
        %v734 = vadd.f32 %v631, %v733
        %v735 = vpop.f32.mrb[0].mxu0
        %736 = vmatprep.mubr.bf16.mxu0 0
        %737 = vmatmul.mubr.bf16.gmra.mrb[0].mxu0 %v606
        %v738 = vpop.f32.mrb[0].mxu0
        %v739 = vadd.f32 %v631, %v738
        %v740 = vpop.f32.mrb[0].mxu0
        %v741 = vpop.f32.mrb[0].mxu0
        %v742 = vadd.f32 %v631, %v741
        %v743 = vpop.f32.mrb[0].mxu0
        %744 = vmatprep.mubr.bf16.mxu0 0
        %745 = vmatmul.mubr.bf16.gmra.mrb[0].mxu0 %v607
        %v746 = vpop.f32.mrb[0].mxu0
        %v747 = vadd.f32 %v631, %v746
        %v748 = vpop.f32.mrb[0].mxu0
        %v749 = vpop.f32.mrb[0].mxu0
        %v750 = vadd.f32 %v631, %v749
        %v751 = vpop.f32.mrb[0].mxu0
        %752 = vmatprep.mubr.bf16.mxu0 0
        %753 = vmatmul.mubr.bf16.gmra.mrb[0].mxu0 %v608
        %v754 = vpop.f32.mrb[0].mxu0
        %v755 = vadd.f32 %v631, %v754
        %v756 = vpop.f32.mrb[0].mxu0
        %v757 = vpop.f32.mrb[0].mxu0
        %v758 = vadd.f32 %v631, %v757
        %v759 = vpop.f32.mrb[0].mxu0
        %760 = vmatprep.mubr.bf16.mxu0 0
        %761 = vmatmul.mubr.bf16.gmra.mrb[0].mxu0 %v609
        %v762 = vpop.f32.mrb[0].mxu0
        %v763 = vadd.f32 %v631, %v762
        %v764 = vpop.f32.mrb[0].mxu0
        %v765 = vpop.f32.mrb[0].mxu0
        %v766 = vadd.f32 %v631, %v765
        %v767 = vpop.f32.mrb[0].mxu0
        %768 = vmatprep.mubr.bf16.mxu0 0
        %769 = vmatmul.mubr.bf16.gmra.mrb[0].mxu0 %v610
        %v770 = vpop.f32.mrb[0].mxu0
        %v771 = vadd.f32 %v631, %v770
        %v772 = vpop.f32.mrb[0].mxu0
        %v773 = vpop.f32.mrb[0].mxu0
        %v774 = vadd.f32 %v631, %v773
        %v775 = vpop.f32.mrb[0].mxu0
        %776 = vdwg.mxu0
        %v777 = vmax.f32 %v715, 0.0
        %v778 = vmax.f32 %v718, 0.0
        %v779 = vmax.f32 %v723, 0.0
        %v780 = vmax.f32 %v726, 0.0
        %v781 = vmax.f32 %v731, 0.0
        %v782 = vmax.f32 %v734, 0.0
        %v783 = vmax.f32 %v739, 0.0
        %v784 = vmax.f32 %v742, 0.0
        %v785 = vmax.f32 %v747, 0.0
        %v786 = vmax.f32 %v750, 0.0
        %v787 = vmax.f32 %v755, 0.0
        %v788 = vmax.f32 %v758, 0.0
        %v789 = vmax.f32 %v763, 0.0
        %v790 = vmax.f32 %v766, 0.0
        %v791 = vmax.f32 %v771, 0.0
        %v792 = vmax.f32 %v774, 0.0
        %v793 = vpack.c.bf16 %v778, %v777
        %v794 = vpack.c.bf16 %v780, %v779
        %v795 = vpack.c.bf16 %v782, %v781
        %v796 = vpack.c.bf16 %v784, %v783
        %v797 = vpack.c.bf16 %v786, %v785
        %v798 = vpack.c.bf16 %v788, %v787
        %v799 = vpack.c.bf16 %v790, %v789
        %v800 = vpack.c.bf16 %v792, %v791
        %v801 = vld [vmem:[#allocation5 + $0xc0] sm:$0xf]
        %v802 = vld [vmem:[#allocation5 + $0xc4] sm:$0xf]
        %v803 = vld [vmem:[#allocation5 + $0xc8] sm:$0xf]
        %v804 = vld [vmem:[#allocation5 + $0xcc] sm:$0xf]
        %v805 = vld [vmem:[#allocation5 + $0xd0] sm:$0xf]
        %v806 = vld [vmem:[#allocation5 + $0xd4] sm:$0xf]
        %v807 = vld [vmem:[#allocation5 + $0xd8] sm:$0xf]
        %v808 = vld [vmem:[#allocation5 + $0xdc] sm:$0xf]
        %v809 = vld [vmem:[#allocation5 + $0xe0] sm:$0xf]
        %v810 = vld [vmem:[#allocation5 + $0xe4] sm:$0xf]
        %v811 = vld [vmem:[#allocation5 + $0xe8] sm:$0xf]
        %v812 = vld [vmem:[#allocation5 + $0xec] sm:$0xf]
        %v813 = vld [vmem:[#allocation5 + $0xf0] sm:$0xf]
        %v814 = vld [vmem:[#allocation5 + $0xf4] sm:$0xf]
        %v815 = vld [vmem:[#allocation5 + $0xf8] sm:$0xf]
        %v816 = vld [vmem:[#allocation5 + $0xfc] sm:$0xf]
        %v817 = vld [vmem:[%s2 + $0x3] sm:$0x1]
        %v818 = vlaneseq
        %v819 = vshrl.u32 %v818, 7
        %v820 = vsub.s32 0, %v819
        %v821 = vrot.slane %v817, %v820
        %v838 = vunpack.c.l.b16 %v801
        %v839 = vunpack.c.l.b16 %v802
        %v840 = vunpack.c.l.b16 %v803
        %v841 = vunpack.c.l.b16 %v804
        %v842 = vunpack.c.l.b16 %v805
        %v843 = vunpack.c.l.b16 %v806
        %v844 = vunpack.c.l.b16 %v807
        %v845 = vunpack.c.l.b16 %v808
        %v846 = vunpack.c.l.b16 %v809
        %v847 = vunpack.c.l.b16 %v810
        %v848 = vunpack.c.l.b16 %v811
        %v849 = vunpack.c.l.b16 %v812
        %v850 = vunpack.c.l.b16 %v813
        %v851 = vunpack.c.l.b16 %v814
        %v852 = vunpack.c.l.b16 %v815
        %v853 = vunpack.c.l.b16 %v816
        %v854 = vpack.c.b16 %v839, %v838
        %v855 = vpack.c.b16 %v841, %v840
        %v856 = vpack.c.b16 %v843, %v842
        %v857 = vpack.c.b16 %v845, %v844
        %v858 = vpack.c.b16 %v847, %v846
        %v859 = vpack.c.b16 %v849, %v848
        %v860 = vpack.c.b16 %v851, %v850
        %v861 = vpack.c.b16 %v853, %v852
        %870 = vmatprep.subr.bf16.mxu0 0
        %871 = vmatpush1.bf16.msra.mxu0 %v854
        %872 = vmatprep.subr.bf16.mxu0 0
        %873 = vmatpush1.bf16.msra.mxu0 %v855
        %874 = vmatprep.subr.bf16.mxu0 0
        %875 = vmatpush1.bf16.msra.mxu0 %v856
        %876 = vmatprep.subr.bf16.mxu0 0
        %877 = vmatpush1.bf16.msra.mxu0 %v857
        %878 = vmatprep.subr.bf16.mxu0 0
        %879 = vmatpush1.bf16.msra.mxu0 %v858
        %880 = vmatprep.subr.bf16.mxu0 0
        %881 = vmatpush1.bf16.msra.mxu0 %v859
        %882 = vmatprep.subr.bf16.mxu0 0
        %883 = vmatpush1.bf16.msra.mxu0 %v860
        %884 = vmatprep.subr.bf16.mxu0 0
        %885 = vmatpush1.bf16.msra.mxu0 %v861
        %886 = vmatprep.subr.bf16.mxu0 0
        %887 = vmatpush1.bf16.msra.mxu0 0
        %888 = vmatprep.subr.bf16.mxu0 0
        %889 = vmatpush1.bf16.msra.mxu0 0
        %890 = vmatprep.subr.bf16.mxu0 0
        %891 = vmatpush1.bf16.msra.mxu0 0
        %892 = vmatprep.subr.bf16.mxu0 0
        %893 = vmatpush1.bf16.msra.mxu0 0
        %894 = vmatprep.subr.bf16.mxu0 0
        %895 = vmatpush1.bf16.msra.mxu0 0
        %896 = vmatprep.subr.bf16.mxu0 0
        %897 = vmatpush1.bf16.msra.mxu0 0
        %898 = vmatprep.subr.bf16.mxu0 0
        %899 = vmatpush1.bf16.msra.mxu0 0
        %900 = vmatprep.subr.bf16.mxu0 0
        %901 = vmatpush1.bf16.msra.mxu0 0
        %902 = vmatprep.mubr.bf16.mxu0 0
        %903 = vmatmul.mubr.bf16.gmra.mrb[0].mxu0 %v793
        %v904 = vpop.f32.mrb[0].mxu0
        %v905 = vadd.f32 %v821, %v904
        %v906 = vpop.f32.mrb[0].mxu0
        %v907 = vpop.f32.mrb[0].mxu0
        %v908 = vadd.f32 %v821, %v907
        %v909 = vpop.f32.mrb[0].mxu0
        %910 = vmatprep.mubr.bf16.mxu0 0
        %911 = vmatmul.mubr.bf16.gmra.mrb[0].mxu0 %v794
        %v912 = vpop.f32.mrb[0].mxu0
        %v913 = vadd.f32 %v821, %v912
        %v914 = vpop.f32.mrb[0].mxu0
        %v915 = vpop.f32.mrb[0].mxu0
        %v916 = vadd.f32 %v821, %v915
        %v917 = vpop.f32.mrb[0].mxu0
        %918 = vmatprep.mubr.bf16.mxu0 0
        %919 = vmatmul.mubr.bf16.gmra.mrb[0].mxu0 %v795
        %v920 = vpop.f32.mrb[0].mxu0
        %v921 = vadd.f32 %v821, %v920
        %v922 = vpop.f32.mrb[0].mxu0
        %v923 = vpop.f32.mrb[0].mxu0
        %v924 = vadd.f32 %v821, %v923
        %v925 = vpop.f32.mrb[0].mxu0
        %926 = vmatprep.mubr.bf16.mxu0 0
        %927 = vmatmul.mubr.bf16.gmra.mrb[0].mxu0 %v796
        %v928 = vpop.f32.mrb[0].mxu0
        %v929 = vadd.f32 %v821, %v928
        %v930 = vpop.f32.mrb[0].mxu0
        %v931 = vpop.f32.mrb[0].mxu0
        %v932 = vadd.f32 %v821, %v931
        %v933 = vpop.f32.mrb[0].mxu0
        %934 = vmatprep.mubr.bf16.mxu0 0
        %935 = vmatmul.mubr.bf16.gmra.mrb[0].mxu0 %v797
        %v936 = vpop.f32.mrb[0].mxu0
        %v937 = vadd.f32 %v821, %v936
        %v938 = vpop.f32.mrb[0].mxu0
        %v939 = vpop.f32.mrb[0].mxu0
        %v940 = vadd.f32 %v821, %v939
        %v941 = vpop.f32.mrb[0].mxu0
        %942 = vmatprep.mubr.bf16.mxu0 0
        %943 = vmatmul.mubr.bf16.gmra.mrb[0].mxu0 %v798
        %v944 = vpop.f32.mrb[0].mxu0
        %v945 = vadd.f32 %v821, %v944
        %v946 = vpop.f32.mrb[0].mxu0
        %v947 = vpop.f32.mrb[0].mxu0
        %v948 = vadd.f32 %v821, %v947
        %v949 = vpop.f32.mrb[0].mxu0
        %950 = vmatprep.mubr.bf16.mxu0 0
        %951 = vmatmul.mubr.bf16.gmra.mrb[0].mxu0 %v799
        %v952 = vpop.f32.mrb[0].mxu0
        %v953 = vadd.f32 %v821, %v952
        %v954 = vpop.f32.mrb[0].mxu0
        %v955 = vpop.f32.mrb[0].mxu0
        %v956 = vadd.f32 %v821, %v955
        %v957 = vpop.f32.mrb[0].mxu0
        %958 = vmatprep.mubr.bf16.mxu0 0
        %959 = vmatmul.mubr.bf16.gmra.mrb[0].mxu0 %v800
        %v960 = vpop.f32.mrb[0].mxu0
        %v961 = vadd.f32 %v821, %v960
        %v962 = vpop.f32.mrb[0].mxu0
        %v963 = vpop.f32.mrb[0].mxu0
        %v964 = vadd.f32 %v821, %v963
        %v965 = vpop.f32.mrb[0].mxu0
        %966 = vdwg.mxu0
        %967 = vst [vmem:[%s203] sm:$0xff] %v905
        %968 = vst [vmem:[%s203 + $0x8] sm:$0xff] %v908
        %969 = vst [vmem:[%s203 + $0x10] sm:$0xff] %v913
        %970 = vst [vmem:[%s203 + $0x18] sm:$0xff] %v916
        %971 = vst [vmem:[%s203 + $0x20] sm:$0xff] %v921
        %972 = vst [vmem:[%s203 + $0x28] sm:$0xff] %v924
        %973 = vst [vmem:[%s203 + $0x30] sm:$0xff] %v929
        %974 = vst [vmem:[%s203 + $0x38] sm:$0xff] %v932
        %975 = vst [vmem:[%s203 + $0x40] sm:$0xff] %v937
        %976 = vst [vmem:[%s203 + $0x48] sm:$0xff] %v940
        %977 = vst [vmem:[%s203 + $0x50] sm:$0xff] %v945
        %978 = vst [vmem:[%s203 + $0x58] sm:$0xff] %v948
        %979 = vst [vmem:[%s203 + $0x60] sm:$0xff] %v953
        %980 = vst [vmem:[%s203 + $0x68] sm:$0xff] %v956
        %981 = vst [vmem:[%s203 + $0x70] sm:$0xff] %v961
        %982 = vst [vmem:[%s203 + $0x78] sm:$0xff] %v964
        %s983 = sand.u32 %s97, 1
        %s984 = scalar_lea.sflag [#allocation4], %s983
        %s985 = sand.u32 %s97, 1
        %s986 = smul.addr %s985, 128
        %s987 = scalar_lea.vmem [#allocation7], %s986
        // Predicated region
        $region41: #{tpu_custom_call.1} parent=31 // pred_check
          %p988 = pneg %p107
        $region42: #{tpu_custom_call.1} parent=31 // pred_check_branch
          %990 = sbr.rel (%p988) target = $region44
        $region43: #{tpu_custom_call.1} parent=31 // pred_region
          %s991 = smul.u32 16, %s21
          %s993 = ssub.s32 2048, 2048
          %994 = vsyncadd %s984, %s993
          %s995 = smul.addr %s991, 128
          %s996 = scalar_lea.hbm %s3, %s995
          %s997 = sshll.u32 %s987, 4
          %s998 = int_to_ptr.vmem [resolvable:$true] %s997
          %1003 = dma.vmem_to_hbm [thread:$0]  %s998, 2048, %s996, %s984, 128, 128, 8
        $region44: #{tpu_custom_call.1} parent=31 // pred_fallthru
          _
      $region32: #{tpu_custom_call.1} parent=5 // pred_fallthru
        _
      %p1004 = scmp.le.s32.totalorder 2, %s16
      // Predicated region
      $region45: #{tpu_custom_call.1} parent=5 // pred_check
        %p1005 = pneg %p1004
      $region46: #{tpu_custom_call.1} parent=5 // pred_check_branch
        %1007 = sbr.rel (%p1005) target = $region48
      $region47: #{tpu_custom_call.1} parent=5 // pred_region
        %s1008 = ssub.s32 %s16, 2
        // Predicated region
        $region49: #{tpu_custom_call.1} parent=47 // pred_check
          %p1009 = pneg %p113
        $region50: #{tpu_custom_call.1} parent=47 // pred_check_branch
          %1011 = sbr.rel (%p1009) target = $region52
        $region51: #{tpu_custom_call.1} parent=47 // pred_region
          %s1012 = sand.u32 %s98, 1
          %s1013 = scalar_lea.sflag [#allocation4], %s1012
          %s1014 = sand.u32 %s98, 1
          %s1015 = smul.addr %s1014, 128
          %s1016 = scalar_lea.vmem [#allocation7], %s1015
          %1017 = dma.done %s1013, 2048
        $region52: #{tpu_custom_call.1} parent=47 // pred_fallthru
          _
      $region48: #{tpu_custom_call.1} parent=5 // pred_fallthru
        _
    $region6: #{tpu_custom_call.1} parent=1 // loop_footer
      %s20 = sadd.s32 1, %s16
    $region7: #{tpu_custom_call.1} parent=1 // loop_footer_branch
      %15 = sbr.rel target = $region3
    $region8: #{tpu_custom_call.1} parent=1 // loop_exit
      _
    %1018 = vsyncpa [#allocation3], 1
    %s1019 = scalar_lea.sflag [#allocation3], 1
    %1020 = vsyncpa %s1019, 1
    %1021 = vsyncpa [#allocation6], 1
    %1022 = vsyncpa [#allocation4], 1
    %s1023 = scalar_lea.sflag [#allocation4], 1
    %1024 = vsyncpa %s1023, 1

</llo_original>
